<compile_context>
chip_gen: v7x
topology: tpu7x:2x2x1
jax: 0.10.0
libtpu: 0.0.40
codegen_flags: <defaults>
</compile_context>

<pallas_src>
from collections import defaultdict

import numpy as np

import jax
import jax.numpy as jnp
from jax.experimental import pallas as pl
from jax.experimental.pallas import tpu as pltpu


_LANE = 128
_SUBLANE = 8
_TILE_I_TARGET = 256   # MXU-friendly; bf16 adj tile (2 bufs) stays far below the
                       # 32 MiB scoped-VMEM default even for N_j in the tens of K.


def _round_up(x, m):
    return (x + m - 1) // m * m


def _pick_tile_i(n_i, target=_TILE_I_TARGET):
    """Largest legal N_i tile <= target (multiple of 8, divides n_i, or full)."""
    if n_i <= target:
        return n_i
    if n_i % target == 0:
        return target
    for t in range(target - target % _SUBLANE, 0, -_SUBLANE):
        if n_i % t == 0:
            return t
    return n_i  # no multiple-of-8 divisor: fall back to full extent (still legal)


# ----------------------------- Pallas kernels ------------------------------ #

def _xw_kernel(x_ref, w_ref, xw_ref):
    """One grid step = one relation sub-type k:  xw[k] = x @ W[k].

    bf16 operands, f32 accumulation on the MXU, stored back as bf16 (lane-padded).
    """
    xw_ref[...] = jnp.dot(
        x_ref[...], w_ref[...], preferred_element_type=jnp.float32
    ).astype(xw_ref.dtype)


def _adj_xw_kernel(adj_ref, xw_ref, o_ref):
    """One grid step = (N_i tile i, relation k):  o[i] += adj[k, i] @ xw[k].

    The output block is resident across the inner rt axis and doubles as the f32
    accumulator; ReLU is applied in place on the final k.
    """
    k = pl.program_id(1)

    @pl.when(k == 0)
    def _():
        o_ref[...] = jnp.zeros_like(o_ref)

    o_ref[...] += jnp.dot(
        adj_ref[...], xw_ref[...], preferred_element_type=jnp.float32
    )

    @pl.when(k == pl.num_programs(1) - 1)
    def _():
        o_ref[...] = jnp.maximum(o_ref[...], 0.0)


# ------------------------------ Layer wrapper ------------------------------ #

@jax.jit
def graph_conv_layer(x, w, adj):
    """relu( sum_k adj[k] @ (x @ w[k]) ) with bf16 MXU operands, f32 accumulation.

    x   : [N_j, D_in]   float32
    w   : [rt, D_in, D_out]
    adj : [rt, N_i, N_j]
    ->    [N_i, D_out]  float32
    """
    rt, n_i, n_j = adj.shape
    rt_w, d_in, d_out = w.shape
    assert rt_w == rt and x.shape == (n_j, d_in)

    d_pad = _round_up(d_out, _LANE)      # lane-dense output slab (unmasked stores)
    tile_i = _pick_tile_i(n_i)
    n_i_tiles = n_i // tile_i

    x16 = x.astype(jnp.bfloat16)
    w16 = w.astype(jnp.bfloat16)
    adj16 = adj.astype(jnp.bfloat16)
    if d_pad != d_out:
        w16 = jnp.pad(w16, ((0, 0), (0, 0), (0, d_pad - d_out)))

    # (1) Hoisted per-relation feature transform: xw[k] = x @ W[k].
    xw = pl.pallas_call(
        _xw_kernel,
        out_shape=jax.ShapeDtypeStruct((rt, n_j, d_pad), jnp.bfloat16),
        grid_spec=pltpu.PrefetchScalarGridSpec(
            num_scalar_prefetch=0,
            grid=(rt,),
            in_specs=[
                pl.BlockSpec((n_j, d_in), lambda k: (0, 0)),
                pl.BlockSpec((None, d_in, d_pad), lambda k: (k, 0, 0)),
            ],
            out_specs=pl.BlockSpec((None, n_j, d_pad), lambda k: (k, 0, 0)),
        ),
        compiler_params=pltpu.CompilerParams(
            dimension_semantics=("parallel",)),
    )(x16, w16)

    # (2) out = relu( sum_k adj[k] @ xw[k] ), tiled over N_i.
    out = pl.pallas_call(
        _adj_xw_kernel,
        out_shape=jax.ShapeDtypeStruct((n_i, d_pad), jnp.float32),
        grid_spec=pltpu.PrefetchScalarGridSpec(
            num_scalar_prefetch=0,
            grid=(n_i_tiles, rt),          # N_i tiles parallel, rt = reduction
            in_specs=[
                pl.BlockSpec((None, tile_i, n_j), lambda i, k: (k, i, 0)),
                pl.BlockSpec((None, n_j, d_pad), lambda i, k: (k, 0, 0)),
            ],
            out_specs=pl.BlockSpec((tile_i, d_pad), lambda i, k: (i, 0)),
        ),
        compiler_params=pltpu.CompilerParams(
            dimension_semantics=("parallel", "arbitrary")),
    )(adj16, xw)

    return out[:, :d_out] if d_pad != d_out else out


# ----------------------------- Encoder wrapper ------------------------------ #

class GCNEncoderPallas:
    """JAX/Pallas re-implementation of GCNEncoder.forward."""

    def __init__(self, rt_num_dict_s1, rt_num_dict_s2, feat_num_dict,
                 num_nodes_dict, hid_dims, key):
        self.rt_num_dict_s1 = rt_num_dict_s1
        self.rt_num_dict_s2 = rt_num_dict_s2
        self.hid_dims = hid_dims
        self.dropout = 0.0  # matches GCNEncoder.__init__

        self.weights = {}   # layer name -> W [rt, D_in, D_out] (f32)
        self.adjs = {}      # layer name -> adj [rt, N_i, N_j]  (f32, row-normalized)

        def glorot(k, shape):
            fan_in, fan_out = shape[-2], shape[-1]
            limit = jnp.sqrt(6.0 / (fan_in + fan_out))
            return jax.random.uniform(k, shape, jnp.float32, -limit, limit)

        def make_adj(k, rt, n_i, n_j):
            a = jax.random.uniform(k, (rt, n_i, n_j), jnp.float32)
            return a / jnp.sum(a, axis=-1, keepdims=True)  # row-normalize

        keys = iter(jax.random.split(key, 4 * (len(rt_num_dict_s1)
                                               + len(rt_num_dict_s2)) + 8))

        # stage 1: adjacency shared between l1 and l2 of the same rel_type
        for (i, j), rt in rt_num_dict_s1.items():
            adj = make_adj(next(keys), rt, num_nodes_dict[i], num_nodes_dict[j])
            self.adjs[f's1_l1_i{i}_j{j}'] = adj
            self.adjs[f's1_l2_i{i}_j{j}'] = adj
            self.weights[f's1_l1_i{i}_j{j}'] = glorot(
                next(keys), (rt, feat_num_dict[j], hid_dims[0]))
            self.weights[f's1_l2_i{i}_j{j}'] = glorot(
                next(keys), (rt, hid_dims[0], hid_dims[1]))

        # stage 2
        for (i, j), rt in rt_num_dict_s2.items():
            adj = make_adj(next(keys), rt, num_nodes_dict[i], num_nodes_dict[j])
            self.adjs[f's2_l1_i{i}_j{j}'] = adj
            self.adjs[f's2_l2_i{i}_j{j}'] = adj
            self.weights[f's2_l1_i{i}_j{j}'] = glorot(
                next(keys), (rt, hid_dims[1], hid_dims[2]))
            self.weights[f's2_l2_i{i}_j{j}'] = glorot(
                next(keys), (rt, hid_dims[2], hid_dims[3]))

    def _get_embed(self, prefix, rt_num_dict, inputs):
        embed_dict = defaultdict(list)
        for (i, j) in rt_num_dict:
            name = f'{prefix}_i{i}_j{j}'
            embed_dict[i].append(
                graph_conv_layer(inputs[j], self.weights[name], self.adjs[name]))
        result = {}
        for i, embeds in embed_dict.items():
            # torch.squeeze(torch.sum(torch.stack(embeds), dim=0, keepdim=True))
            result[i] = jnp.sum(jnp.stack(embeds, axis=0), axis=0)
        return result

    def __call__(self, inputs):
        embed_s1_1 = self._get_embed('s1_l1', self.rt_num_dict_s1, inputs)
        embed_s1_2 = self._get_embed('s1_l2', self.rt_num_dict_s1, embed_s1_1)
        embed_s2_1 = self._get_embed('s2_l1', self.rt_num_dict_s2, embed_s1_2)
        embed_s2_2 = self._get_embed('s2_l2', self.rt_num_dict_s2, embed_s2_1)
        return embed_s2_2


# --------------------------------- Main ------------------------------------ #

if __name__ == "__main__":
    key = jax.random.PRNGKey(0)
    k_enc, k_x0, k_x1 = jax.random.split(key, 3)

    # Two node types (0 and 1) with small, encoder-consistent shapes.
    num_nodes_dict = {0: 16, 1: 24}
    feat_num_dict = {0: 32, 1: 48}
    hid_dims = [32, 32, 16, 16]
    rt_num_dict_s1 = {(0, 0): 2, (0, 1): 1, (1, 1): 2}
    rt_num_dict_s2 = {(0, 0): 1, (1, 0): 2, (1, 1): 1}

    enc = GCNEncoderPallas(rt_num_dict_s1, rt_num_dict_s2, feat_num_dict,
                           num_nodes_dict, hid_dims, k_enc)

    inputs = {
        0: jax.random.normal(k_x0, (num_nodes_dict[0], feat_num_dict[0]),
                             jnp.float32),
        1: jax.random.normal(k_x1, (num_nodes_dict[1], feat_num_dict[1]),
                             jnp.float32),
    }

    # Light single-layer correctness check vs. a pure-JAX f32 reference
    # (bf16 MXU operands -> loose tolerance).
    name = 's1_l1_i0_j1'
    ref = jax.nn.relu(jnp.einsum('kij,jd,kde->ie',
                                 enc.adjs[name], inputs[1], enc.weights[name]))
    got = graph_conv_layer(inputs[1], enc.weights[name], enc.adjs[name])
    np.testing.assert_allclose(np.asarray(got), np.asarray(ref),
                               rtol=5e-2, atol=5e-2)

    out = enc(inputs)
    for i in sorted(out):
        jax.block_until_ready(out[i])
        assert out[i].shape == (num_nodes_dict[i], hid_dims[3])
        assert out[i].dtype == jnp.float32

    print("KERNEL_OK")
</pallas_src>

<mosaic_0001>
module attributes {stable_mosaic.version = 11 : i64} {
  func.func @_adj_xw_kernel(%arg0: i32, %arg1: i32, %arg2: memref<1x16x24xbf16, #tpu.memory_space<vmem>>, %arg3: memref<1x24x128xbf16, #tpu.memory_space<vmem>>, %arg4: memref<16x128xf32, #tpu.memory_space<vmem>>) attributes {dimension_semantics = [#tpu.dimension_semantics<parallel>, #tpu.dimension_semantics<arbitrary>], iteration_bounds = array<i64: 1, 1>, scalar_prefetch = 0 : i64, scratch_operands = 0 : i64, tpu.core_type = #tpu.core_type<tc>, window_params = [{transform_indices = @transform_0, window_bounds = array<i64: 1, 16, 24>}, {transform_indices = @transform_1, window_bounds = array<i64: 1, 24, 128>}, {transform_indices = @transform_2, window_bounds = array<i64: 16, 128>}]} {
    %c0_i32 = arith.constant 0 : i32
    %0 = arith.cmpi eq, %arg1, %c0_i32 : i32
    %1 = arith.extui %0 : i1 to i32
    %c0_i32_0 = arith.constant 0 : i32
    %2 = arith.cmpi ne, %1, %c0_i32_0 : i32
    scf.if %2 {
      %cst_12 = arith.constant 0.000000e+00 : f32
      %14 = vector.broadcast %cst_12 : f32 to vector<16x128xf32>
      %c0_13 = arith.constant 0 : index
      %c0_14 = arith.constant 0 : index
      %15 = vector.load %arg4[%c0_13, %c0_14] : memref<16x128xf32, #tpu.memory_space<vmem>>, vector<16x128xf32>
      tpu.vector_store %arg4[%c0_13, %c0_14], %14 {strides = array<i32>} : memref<16x128xf32, #tpu.memory_space<vmem>>, vector<16x128xf32>,
    } else {
    }
    %c0 = arith.constant 0 : index
    %c0_1 = arith.constant 0 : index
    %3 = vector.load %arg4[%c0, %c0_1] : memref<16x128xf32, #tpu.memory_space<vmem>>, vector<16x128xf32>
    %c0_2 = arith.constant 0 : index
    %c0_3 = arith.constant 0 : index
    %c0_4 = arith.constant 0 : index
    %4 = vector.load %arg2[%c0_2, %c0_3, %c0_4] : memref<1x16x24xbf16, #tpu.memory_space<vmem>>, vector<1x16x24xbf16>
    %5 = vector.shape_cast %4 : vector<1x16x24xbf16> to vector<16x24xbf16>
    %c0_5 = arith.constant 0 : index
    %c0_6 = arith.constant 0 : index
    %c0_7 = arith.constant 0 : index
    %6 = vector.load %arg3[%c0_5, %c0_6, %c0_7] : memref<1x24x128xbf16, #tpu.memory_space<vmem>>, vector<1x24x128xbf16>
    %7 = vector.shape_cast %6 : vector<1x24x128xbf16> to vector<24x128xbf16>
    %cst = arith.constant dense<0.000000e+00> : vector<16x128xf32>
    %8 = tpu.matmul %5, %7, %cst {dimension_numbers = #tpu.dot_dimension_numbers<[1], [0], [0], [1], [0, 0, 1, 1], [], []>} : vector<16x24xbf16>, vector<24x128xbf16>, vector<16x128xf32> -> vector<16x128xf32>
    %9 = arith.addf %3, %8 : vector<16x128xf32>
    %c0_8 = arith.constant 0 : index
    %c0_9 = arith.constant 0 : index
    %10 = vector.load %arg4[%c0_8, %c0_9] : memref<16x128xf32, #tpu.memory_space<vmem>>, vector<16x128xf32>
    tpu.vector_store %arg4[%c0_8, %c0_9], %9 {strides = array<i32>} : memref<16x128xf32, #tpu.memory_space<vmem>>, vector<16x128xf32>,
    %c0_i32_10 = arith.constant 0 : i32
    %11 = arith.cmpi eq, %arg1, %c0_i32_10 : i32
    %12 = arith.extui %11 : i1 to i32
    %c0_i32_11 = arith.constant 0 : i32
    %13 = arith.cmpi ne, %12, %c0_i32_11 : i32
    scf.if %13 {
      %c0_12 = arith.constant 0 : index
      %c0_13 = arith.constant 0 : index
      %14 = vector.load %arg4[%c0_12, %c0_13] : memref<16x128xf32, #tpu.memory_space<vmem>>, vector<16x128xf32>
      %cst_14 = arith.constant 0.000000e+00 : f32
      %15 = vector.broadcast %cst_14 : f32 to vector<16x128xf32>
      %16 = arith.maximumf %14, %15 : vector<16x128xf32>
      %c0_15 = arith.constant 0 : index
      %c0_16 = arith.constant 0 : index
      %17 = vector.load %arg4[%c0_15, %c0_16] : memref<16x128xf32, #tpu.memory_space<vmem>>, vector<16x128xf32>
      tpu.vector_store %arg4[%c0_15, %c0_16], %16 {strides = array<i32>} : memref<16x128xf32, #tpu.memory_space<vmem>>, vector<16x128xf32>,
    } else {
    }
    return
  }
  func.func @transform_0(%arg0: i32, %arg1: i32) -> (i32, i32, i32) {
    %c0_i32 = arith.constant 0 : i32
    %c0_i32_0 = arith.constant 0 : i32
    return %arg1, %arg0, %c0_i32 : i32, i32, i32
  }
  func.func @transform_1(%arg0: i32, %arg1: i32) -> (i32, i32, i32) {
    %c0_i32 = arith.constant 0 : i32
    %c0_i32_0 = arith.constant 0 : i32
    %c0_i32_1 = arith.constant 0 : i32
    return %arg1, %c0_i32, %c0_i32_0 : i32, i32, i32
  }
  func.func @transform_2(%arg0: i32, %arg1: i32) -> (i32, i32) {
    %c0_i32 = arith.constant 0 : i32
    %c0_i32_0 = arith.constant 0 : i32
    return %arg0, %c0_i32 : i32, i32
  }
}

module attributes {stable_mosaic.version = 11 : i64} {
  func.func @_xw_kernel(%arg0: i32, %arg1: memref<24x48xbf16, #tpu.memory_space<vmem>>, %arg2: memref<1x48x128xbf16, #tpu.memory_space<vmem>>, %arg3: memref<1x24x128xbf16, #tpu.memory_space<vmem>>) attributes {dimension_semantics = [#tpu.dimension_semantics<parallel>], iteration_bounds = array<i64: 1>, scalar_prefetch = 0 : i64, scratch_operands = 0 : i64, tpu.core_type = #tpu.core_type<tc>, window_params = [{pipeline_mode = #tpu.pipeline_mode<synchronous>, transform_indices = @transform_0, window_bounds = array<i64: 24, 48>}, {transform_indices = @transform_1, window_bounds = array<i64: 1, 48, 128>}, {transform_indices = @transform_2, window_bounds = array<i64: 1, 24, 128>}]} {
    %c0 = arith.constant 0 : index
    %c0_0 = arith.constant 0 : index
    %0 = vector.load %arg1[%c0, %c0_0] : memref<24x48xbf16, #tpu.memory_space<vmem>>, vector<24x48xbf16>
    %c0_1 = arith.constant 0 : index
    %c0_2 = arith.constant 0 : index
    %c0_3 = arith.constant 0 : index
    %1 = vector.load %arg2[%c0_1, %c0_2, %c0_3] : memref<1x48x128xbf16, #tpu.memory_space<vmem>>, vector<1x48x128xbf16>
    %2 = vector.shape_cast %1 : vector<1x48x128xbf16> to vector<48x128xbf16>
    %cst = arith.constant dense<0.000000e+00> : vector<24x128xf32>
    %3 = tpu.matmul %0, %2, %cst {dimension_numbers = #tpu.dot_dimension_numbers<[1], [0], [0], [1], [0, 0, 1, 1], [], []>} : vector<24x48xbf16>, vector<48x128xbf16>, vector<24x128xf32> -> vector<24x128xf32>
    %4 = arith.truncf %3 : vector<24x128xf32> to vector<24x128xbf16>
    %c0_4 = arith.constant 0 : index
    %c0_5 = arith.constant 0 : index
    %c0_6 = arith.constant 0 : index
    %5 = vector.load %arg3[%c0_4, %c0_5, %c0_6] : memref<1x24x128xbf16, #tpu.memory_space<vmem>>, vector<1x24x128xbf16>
    %6 = vector.shape_cast %5 : vector<1x24x128xbf16> to vector<24x128xbf16>
    %7 = vector.shape_cast %4 : vector<24x128xbf16> to vector<1x24x128xbf16>
    tpu.vector_store %arg3[%c0_4, %c0_5, %c0_6], %7 {strides = array<i32>} : memref<1x24x128xbf16, #tpu.memory_space<vmem>>, vector<1x24x128xbf16>,
    return
  }
  func.func @transform_0(%arg0: i32) -> (i32, i32) {
    %c0_i32 = arith.constant 0 : i32
    %c0_i32_0 = arith.constant 0 : i32
    %c0_i32_1 = arith.constant 0 : i32
    return %c0_i32, %c0_i32_0 : i32, i32
  }
  func.func @transform_1(%arg0: i32) -> (i32, i32, i32) {
    %c0_i32 = arith.constant 0 : i32
    %c0_i32_0 = arith.constant 0 : i32
    %c0_i32_1 = arith.constant 0 : i32
    return %arg0, %c0_i32, %c0_i32_0 : i32, i32, i32
  }
  func.func @transform_2(%arg0: i32) -> (i32, i32, i32) {
    %c0_i32 = arith.constant 0 : i32
    %c0_i32_0 = arith.constant 0 : i32
    %c0_i32_1 = arith.constant 0 : i32
    return %arg0, %c0_i32, %c0_i32_0 : i32, i32, i32
  }
}

</mosaic_0001>

<llo_original>
// kernel: graph_conv_layer.2
$region0: #{graph_conv_layer.2}
  #allocation0 [shape = 'u32[]', space=smem, size = 0x4, offset = 0x4, fixed_abs, tag = 'smem constant byte address 0x4 - core index']
  #allocation1 [shape = 'u32[144,128]{1,0:T(1,128)}', space=vmem, size = 0x12000, scoped, tag = 'internal scratch']
  %s0 = inlined_call_operand.vmem [shape: bf16[24,48], index: 0, kind: input, shape index: {}]
  %s1 = inlined_call_operand.vmem [shape: bf16[1,48,128], index: 1, kind: input, shape index: {}]
  %s2 = inlined_call_operand.vmem [shape: bf16[1,24,128], index: 2, kind: output, shape index: {}]
  %s3 = sld [smem:[#allocation0]]
  $region18: #{graph_conv_layer.2} parent=0
    _
  %s5 = ssub.s32 1, %s3
  %s6 = scalar_select 0, %s5, %s3
  // Predicated region
  $region2: #{graph_conv_layer.2} parent=0 // pred_check
    _
  $region3: #{graph_conv_layer.2} parent=0 // pred_check_branch
    %8 = sbr.rel (0) target = $region5
  $region4: #{graph_conv_layer.2} parent=0 // pred_region
    _
  $region5: #{graph_conv_layer.2} parent=0 // pred_fallthru
    _
  // Predicated region
  $region6: #{graph_conv_layer.2} parent=0 // pred_check
    _
  $region7: #{graph_conv_layer.2} parent=0 // pred_check_branch
    %10 = sbr.rel (0) target = $region9
  $region8: #{graph_conv_layer.2} parent=0 // pred_region
    _
  $region9: #{graph_conv_layer.2} parent=0 // pred_fallthru
    _
  %v12 = vld [vmem:[%s0] sm:$0xf]
  %v13 = vld [vmem:[%s0 + $0x4] sm:$0xf]
  %v14 = vld [vmem:[%s0 + $0x8] sm:$0xf]
  %v15 = vld [vmem:[%s1] sm:$0xf]
  %v16 = vld [vmem:[%s1 + $0x4] sm:$0xf]
  %v17 = vld [vmem:[%s1 + $0x8] sm:$0xf]
  %v18 = vld [vmem:[%s1 + $0xc] sm:$0xf]
  %v19 = vld [vmem:[%s1 + $0x10] sm:$0xf]
  %v20 = vld [vmem:[%s1 + $0x14] sm:$0xf]
  %v24 = vunpack.c.l.b16 %v12
  %v25 = vunpack.c.l.b16 %v13
  %v26 = vunpack.c.l.b16 %v14
  %v27 = vpack.c.b16 %v25, %v24
  %v28 = vpack.c.b16 %v26, %v26
  %v35 = vunpack.c.l.b16 %v15
  %v36 = vunpack.c.l.b16 %v16
  %v37 = vunpack.c.l.b16 %v17
  %v38 = vunpack.c.l.b16 %v18
  %v39 = vunpack.c.l.b16 %v19
  %v40 = vunpack.c.l.b16 %v20
  %v41 = vpack.c.b16 %v36, %v35
  %v42 = vpack.c.b16 %v38, %v37
  %v43 = vpack.c.b16 %v40, %v39
  %vm47 = vcmask 392192
  %v49 = vsel %vm47, %v27, 0
  %v52 = vsel %vm47, %v28, 0
  %54 = vmatprep.subr.bf16.mxu0 0
  %55 = vmatpush1.bf16.msra.mxu0 %v41
  %56 = vmatprep.subr.bf16.mxu0 0
  %57 = vmatpush1.bf16.msra.mxu0 %v42
  %58 = vmatprep.subr.bf16.mxu0 0
  %59 = vmatpush1.bf16.msra.mxu0 %v43
  %60 = vmatprep.subr.bf16.mxu0 0
  %61 = vmatpush1.bf16.msra.mxu0 0
  %62 = vmatprep.subr.bf16.mxu0 0
  %63 = vmatpush1.bf16.msra.mxu0 0
  %64 = vmatprep.subr.bf16.mxu0 0
  %65 = vmatpush1.bf16.msra.mxu0 0
  %66 = vmatprep.subr.bf16.mxu0 0
  %67 = vmatpush1.bf16.msra.mxu0 0
  %68 = vmatprep.subr.bf16.mxu0 0
  %69 = vmatpush1.bf16.msra.mxu0 0
  %70 = vmatprep.subr.bf16.mxu0 0
  %71 = vmatpush1.bf16.msra.mxu0 0
  %72 = vmatprep.subr.bf16.mxu0 0
  %73 = vmatpush1.bf16.msra.mxu0 0
  %74 = vmatprep.subr.bf16.mxu0 0
  %75 = vmatpush1.bf16.msra.mxu0 0
  %76 = vmatprep.subr.bf16.mxu0 0
  %77 = vmatpush1.bf16.msra.mxu0 0
  %78 = vmatprep.subr.bf16.mxu0 0
  %79 = vmatpush1.bf16.msra.mxu0 0
  %80 = vmatprep.subr.bf16.mxu0 0
  %81 = vmatpush1.bf16.msra.mxu0 0
  %82 = vmatprep.subr.bf16.mxu0 0
  %83 = vmatpush1.bf16.msra.mxu0 0
  %84 = vmatprep.subr.bf16.mxu0 0
  %85 = vmatpush1.bf16.msra.mxu0 0
  %86 = vmatprep.mubr.bf16.mxu0 0
  %87 = vmatmul.mubr.bf16.gmra.mrb[0].mxu0 %v49
  %v88 = vpop.f32.mrb[0].mxu0
  %v89 = vadd.f32 0.0, %v88
  %v90 = vpop.f32.mrb[0].mxu0
  %v91 = vpop.f32.mrb[0].mxu0
  %v92 = vadd.f32 0.0, %v91
  %v93 = vpop.f32.mrb[0].mxu0
  %94 = vmatprep.mubr.bf16.mxu0 0
  %95 = vmatmul.mubr.bf16.gmra.mrb[0].mxu0 %v52
  %v96 = vpop.f32.mrb[0].mxu0
  %v97 = vadd.f32 0.0, %v96
  %v98 = vpop.f32.mrb[0].mxu0
  %v99 = vpop.f32.mrb[0].mxu0
  %v100 = vpop.f32.mrb[0].mxu0
  %101 = vdwg.mxu0
  %v102 = vpack.c.bf16 %v92, %v89
  %v103 = vpack.c.bf16 %v97, %v97
  %v106 = vunpack.c.l.b16 %v102
  %v107 = vunpack.c.h.b16 %v102
  %v108 = vunpack.c.l.b16 %v103
  %v109 = vpack.c.b16 %v106, %v106
  %v110 = vpack.c.b16 %v107, %v107
  %v111 = vpack.c.b16 %v108, %v108
  %115 = vst [vmem:[%s2] sm:$0xf] %v109
  %116 = vst [vmem:[%s2 + $0x4] sm:$0xf] %v110
  %117 = vst [vmem:[%s2 + $0x8] sm:$0xf] %v111
  // Predicated region
  $region10: #{graph_conv_layer.2} parent=0 // pred_check
    _
  $region11: #{graph_conv_layer.2} parent=0 // pred_check_branch
    %119 = sbr.rel (0) target = $region13
  $region12: #{graph_conv_layer.2} parent=0 // pred_region
    _
  $region13: #{graph_conv_layer.2} parent=0 // pred_fallthru
    _
  // Predicated region
  $region14: #{graph_conv_layer.2} parent=0 // pred_check
    _
  $region15: #{graph_conv_layer.2} parent=0 // pred_check_branch
    %121 = sbr.rel (0) target = $region17
  $region16: #{graph_conv_layer.2} parent=0 // pred_region
    _
  $region17: #{graph_conv_layer.2} parent=0 // pred_fallthru
    _

// kernel: graph_conv_layer.3
$region0: #{graph_conv_layer.3}
  #allocation0 [shape = 'u32[]', space=smem, size = 0x4, offset = 0x4, fixed_abs, tag = 'smem constant byte address 0x4 - core index']
  #allocation1 [shape = 'u32[144,128]{1,0:T(1,128)}', space=vmem, size = 0x12000, scoped, tag = 'internal scratch']
  %s0 = inlined_call_operand.vmem [shape: bf16[1,16,24], index: 0, kind: input, shape index: {}]
  %s1 = inlined_call_operand.vmem [shape: bf16[1,24,128], index: 1, kind: input, shape index: {}]
  %s2 = inlined_call_operand.hbm [shape: f32[16,128], index: 2, kind: output, shape index: {}]
  %s3 = sld [smem:[#allocation0]]
  $region26: #{graph_conv_layer.3} parent=0
    _
  %s5 = ssub.s32 1, %s3
  %s6 = scalar_select 0, %s5, %s3
  $region1: #{graph_conv_layer.3} parent=0
    #allocation2 [shape = 'u8[8192]{0}', space=vmem, size = 0x2000, scoped, tag = 'output window, operand 0, single buffered']
    #allocation3 [shape = 's32[1]{0}', space=sflag, size = 0x4, scoped, tag = 'scoped memory for graph_conv_layer.3']
    %7 = vsyncpa [#allocation3], 0
    // Predicated region
    $region2: #{graph_conv_layer.3} parent=1 // pred_check
      _
    $region3: #{graph_conv_layer.3} parent=1 // pred_check_branch
      %9 = sbr.rel (0) target = $region5
    $region4: #{graph_conv_layer.3} parent=1 // pred_region
      _
    $region5: #{graph_conv_layer.3} parent=1 // pred_fallthru
      _
    // Predicated region
    $region6: #{graph_conv_layer.3} parent=1 // pred_check
      _
    $region7: #{graph_conv_layer.3} parent=1 // pred_check_branch
      %11 = sbr.rel (0) target = $region9
    $region8: #{graph_conv_layer.3} parent=1 // pred_region
      _
    $region9: #{graph_conv_layer.3} parent=1 // pred_fallthru
      _
    %p13 = scmp.eq.s32.totalorder 0, 0
    // Predicated region
    $region10: #{graph_conv_layer.3} parent=1 // pred_check
      %p14 = pneg %p13
    $region11: #{graph_conv_layer.3} parent=1 // pred_check_branch
      %16 = sbr.rel (%p14) target = $region13
    $region12: #{graph_conv_layer.3} parent=1 // pred_region
      %17 = vst [vmem:[#allocation2] sm:$0xff] 0.0
      %18 = vst [vmem:[#allocation2 + $0x8] sm:$0xff] 0.0
    $region13: #{graph_conv_layer.3} parent=1 // pred_fallthru
      _
    %v19 = vld [vmem:[#allocation2] sm:$0xff]
    %v20 = vld [vmem:[#allocation2 + $0x8] sm:$0xff]
    %v21 = vld [vmem:[%s0] sm:$0xf]
    %v22 = vld [vmem:[%s0 + $0x4] sm:$0xf]
    %v23 = vld [vmem:[%s1] sm:$0xf]
    %v24 = vld [vmem:[%s1 + $0x4] sm:$0xf]
    %v25 = vld [vmem:[%s1 + $0x8] sm:$0xf]
    %v28 = vunpack.c.l.b16 %v21
    %v29 = vunpack.c.l.b16 %v22
    %v30 = vpack.c.b16 %v29, %v28
    %v34 = vunpack.c.l.b16 %v23
    %v35 = vunpack.c.l.b16 %v24
    %v36 = vunpack.c.l.b16 %v25
    %v37 = vpack.c.b16 %v35, %v34
    %v38 = vpack.c.b16 %v36, %v36
    %vm40 = vcmask 195584
    %v42 = vsel %vm40, %v30, 0
    %vm44 = vcmask 1043456
    %v46 = vsel %vm44, %v38, 0
    %48 = vmatprep.subr.bf16.mxu0 0
    %49 = vmatpush1.bf16.msra.mxu0 %v37
    %50 = vmatprep.subr.bf16.mxu0 0
    %51 = vmatpush1.bf16.msra.mxu0 %v46
    %52 = vmatprep.subr.bf16.mxu0 0
    %53 = vmatpush1.bf16.msra.mxu0 0
    %54 = vmatprep.subr.bf16.mxu0 0
    %55 = vmatpush1.bf16.msra.mxu0 0
    %56 = vmatprep.subr.bf16.mxu0 0
    %57 = vmatpush1.bf16.msra.mxu0 0
    %58 = vmatprep.subr.bf16.mxu0 0
    %59 = vmatpush1.bf16.msra.mxu0 0
    %60 = vmatprep.subr.bf16.mxu0 0
    %61 = vmatpush1.bf16.msra.mxu0 0
    %62 = vmatprep.subr.bf16.mxu0 0
    %63 = vmatpush1.bf16.msra.mxu0 0
    %64 = vmatprep.subr.bf16.mxu0 0
    %65 = vmatpush1.bf16.msra.mxu0 0
    %66 = vmatprep.subr.bf16.mxu0 0
    %67 = vmatpush1.bf16.msra.mxu0 0
    %68 = vmatprep.subr.bf16.mxu0 0
    %69 = vmatpush1.bf16.msra.mxu0 0
    %70 = vmatprep.subr.bf16.mxu0 0
    %71 = vmatpush1.bf16.msra.mxu0 0
    %72 = vmatprep.subr.bf16.mxu0 0
    %73 = vmatpush1.bf16.msra.mxu0 0
    %74 = vmatprep.subr.bf16.mxu0 0
    %75 = vmatpush1.bf16.msra.mxu0 0
    %76 = vmatprep.subr.bf16.mxu0 0
    %77 = vmatpush1.bf16.msra.mxu0 0
    %78 = vmatprep.subr.bf16.mxu0 0
    %79 = vmatpush1.bf16.msra.mxu0 0
    %80 = vmatprep.mubr.bf16.mxu0 0
    %81 = vmatmul.mubr.bf16.gmra.mrb[0].mxu0 %v42
    %v82 = vpop.f32.mrb[0].mxu0
    %v83 = vadd.f32 0.0, %v82
    %v84 = vpop.f32.mrb[0].mxu0
    %v85 = vpop.f32.mrb[0].mxu0
    %v86 = vadd.f32 0.0, %v85
    %v87 = vpop.f32.mrb[0].mxu0
    %88 = vdwg.mxu0
    %v89 = vadd.f32 %v19, %v83
    %v90 = vadd.f32 %v20, %v86
    %91 = vst [vmem:[#allocation2] sm:$0xff] %v89
    %92 = vst [vmem:[#allocation2 + $0x8] sm:$0xff] %v90
    // Predicated region
    $region14: #{graph_conv_layer.3} parent=1 // pred_check
      %p93 = pneg %p13
    $region15: #{graph_conv_layer.3} parent=1 // pred_check_branch
      %95 = sbr.rel (%p93) target = $region17
    $region16: #{graph_conv_layer.3} parent=1 // pred_region
      %v96 = vld [vmem:[#allocation2] sm:$0xff]
      %v97 = vld [vmem:[#allocation2 + $0x8] sm:$0xff]
      %v98 = vmax.f32 %v96, 0.0
      %v99 = vmax.f32 %v97, 0.0
      %100 = vst [vmem:[#allocation2] sm:$0xff] %v98
      %101 = vst [vmem:[#allocation2 + $0x8] sm:$0xff] %v99
    $region17: #{graph_conv_layer.3} parent=1 // pred_fallthru
      _
    // Predicated region
    $region18: #{graph_conv_layer.3} parent=1 // pred_check
      _
    $region19: #{graph_conv_layer.3} parent=1 // pred_check_branch
      %103 = sbr.rel (0) target = $region21
    $region20: #{graph_conv_layer.3} parent=1 // pred_region
      %s105 = ssub.s32 256, 256
      %106 = vsyncadd [#allocation3], %s105
      %s107 = sshll.u32 [#allocation2], 4
      %s108 = int_to_ptr.vmem [resolvable:$true] %s107
      %113 = dma.vmem_to_hbm [thread:$0]  %s108, 256, %s2, [#allocation3], 128, 128, 8
    $region21: #{graph_conv_layer.3} parent=1 // pred_fallthru
      _
    // Predicated region
    $region22: #{graph_conv_layer.3} parent=1 // pred_check
      _
    $region23: #{graph_conv_layer.3} parent=1 // pred_check_branch
      %115 = sbr.rel (0) target = $region25
    $region24: #{graph_conv_layer.3} parent=1 // pred_region
      %116 = dma.done [#allocation3], 256
    $region25: #{graph_conv_layer.3} parent=1 // pred_fallthru
      _
    %117 = vsyncpa [#allocation3], 1

</llo_original>
